<compile_context>
chip_gen: v6e
topology: v6e:2x2x1
jax: 0.10.0
libtpu: 0.0.40
codegen_flags: <defaults>
</compile_context>

<pallas_src>
import jax
import jax.numpy as jnp
from jax import lax
from jax.experimental import pallas as pl
from jax.experimental.pallas import tpu as pltpu

OUTPUT_DIM = 2


def cluster_embedding_kernel(embt_ref, ytt_ref, yhatt_ref, stats_ref):
    embt = embt_ref[...]                                    # (D, N) f32, N on lanes
    ytt = ytt_ref[...]                                      # (C, N) f32, N on lanes
    d_dim, n = embt.shape

    # ---- mu() / pi(): column sums over examples = lane reductions per cluster row ----
    colsum = jnp.sum(ytt, axis=1, keepdims=True)            # (C, 1)
    # TODO(synk): guard colsum against empty clusters (max(colsum, eps)) if needed;
    #   left as-is for exact parity with the PyTorch module.
    inv_colsum = 1.0 / colsum                               # exact (feeds dist quadratically)

    # mu[c, d] = (sum_n yt[n,c] * z[n,d]) / colsum[c] : D multiply + lane-reduce pairs.
    mu_cols = []
    for di in range(d_dim):                                 # D=2, static unroll
        s = jnp.sum(ytt * embt[di:di + 1, :], axis=1, keepdims=True)   # (C, 1)
        mu_cols.append(s * inv_colsum)

    pi = colsum * jnp.float32(1.0 / n)                      # (C, 1)

    # ---- softmax_class(z, mu, weights=pi), transposed orientation ----
    # dist^T[c, n] = sum_d (z[n,d] - mu[c,d])^2, expanded on the VPU (no tiny-K MXU op).
    diff0 = embt[0:1, :] - mu_cols[0]                       # (C, N) via broadcast
    dist = diff0 * diff0
    for di in range(1, d_dim):
        diff = embt[di:di + 1, :] - mu_cols[di]
        dist = dist + diff * diff

    # Exact per-example shift (cancels in the normalization, avoids exp underflow).
    dist = dist - jnp.min(dist, axis=0, keepdims=True)      # (1, N) sublane min of C rows

    y = jnp.exp(-dist) * pi                                 # (C, N)
    yhat = y / jnp.sum(y, axis=0, keepdims=True)            # exact row normalization
    yhatt_ref[...] = yhat                                   # y_hat^T, lane-dense output

    # ---- loss() and frobenius(), packed into one (1, 2) output with a single store ----
    kl = -ytt * jnp.log(yhat + 1e-8)
    df = ytt - yhat
    loss = jnp.sum(jnp.sum(kl, axis=1, keepdims=True), axis=0, keepdims=True)        # (1, 1)
    frob = jnp.sum(jnp.sum(df * df, axis=1, keepdims=True), axis=0, keepdims=True)   # (1, 1)
    lane = lax.broadcasted_iota(jnp.int32, (1, 2), 1)
    stats_ref[...] = jnp.where(lane == 0, loss, frob)       # [kl loss, frobenius]


def cluster_embedding(emb_weight, y_target):
    """ClusterEmbedding forward + soft_matrix + loss + frobenius, fused.

    The module fixes inds = arange(n_examples), so forward() is an identity on the
    embedding table (returned straight from the wrapper, no kernel output).
    Returns (z, y_hat, kl_loss, frobenius) in the module's (N, D)/(N, C) layout.
    """
    emb_weight = emb_weight.astype(jnp.float32)
    y_target = y_target.astype(jnp.float32)
    n, _ = emb_weight.shape
    c = y_target.shape[1]
    vmem = pltpu.MemorySpace.VMEM

    out_shape = (
        jax.ShapeDtypeStruct((c, n), jnp.float32),   # y_hat^T (lane-dense)
        jax.ShapeDtypeStruct((1, 2), jnp.float32),   # [kl loss, frobenius]
    )
    yhat_t, stats = pl.pallas_call(
        cluster_embedding_kernel,
        out_shape=out_shape,
        in_specs=[pl.BlockSpec(memory_space=vmem)] * 2,
        out_specs=(pl.BlockSpec(memory_space=vmem),
                   pl.BlockSpec(memory_space=vmem)),
    )(emb_weight.T, y_target.T)                      # wrapper-side layout plumbing

    z = emb_weight                                   # forward(): identity lookup
    return z, yhat_t.T, stats[0, 0], stats[0, 1]


def _reference(emb_weight, y_target):
    """Pure-JAX reference mirroring the PyTorch formulas."""
    z = emb_weight                                            # inds = arange -> identity gather
    colsum = y_target.sum(0)
    mu = (y_target.T @ z) / colsum[:, None]
    pi = colsum / y_target.shape[0]
    dist = ((mu[None, :, :] - z[:, None, :]) ** 2).sum(-1)    # (N, C)
    y = jnp.exp(-dist) * pi[None, :]
    yhat = y / y.sum(1, keepdims=True)
    loss = (-y_target * jnp.log(yhat + 1e-8)).sum()
    frob = ((y_target - yhat) ** 2).sum()
    return z, yhat, loss, frob


if __name__ == "__main__":
    n_examples = 16
    n_clusters = 4

    key = jax.random.PRNGKey(0)
    k_emb, k_yt = jax.random.split(key)

    # Deterministic parameter init: nn.Embedding default ~ N(0, 1)
    emb_weight = jax.random.normal(k_emb, (n_examples, OUTPUT_DIM), dtype=jnp.float32)
    # y_target: synthetic soft cluster-assignment matrix (rows sum to 1, columns nonzero)
    y_target = jax.nn.softmax(jax.random.normal(k_yt, (n_examples, n_clusters),
                                                dtype=jnp.float32), axis=1)

    z, yhat, loss, frob = cluster_embedding(emb_weight, y_target)
    jax.block_until_ready((z, yhat, loss, frob))

    z_ref, yhat_ref, loss_ref, frob_ref = _reference(emb_weight, y_target)
    assert jnp.allclose(z, z_ref, atol=1e-6), "forward() mismatch"
    assert jnp.allclose(yhat, yhat_ref, atol=1e-5), "soft_matrix() mismatch"
    assert jnp.allclose(loss, loss_ref, rtol=1e-4, atol=1e-5), "loss() mismatch"
    assert jnp.allclose(frob, frob_ref, rtol=1e-4, atol=1e-5), "frobenius() mismatch"

    print("KERNEL_OK")
</pallas_src>

<mosaic_0001>
module attributes {stable_mosaic.version = 11 : i64} {
  func.func @cluster_embedding_kernel(%arg0: memref<2x16xf32, #tpu.memory_space<vmem>>, %arg1: memref<4x16xf32, #tpu.memory_space<vmem>>, %arg2: memref<4x16xf32, #tpu.memory_space<vmem>>, %arg3: memref<1x2xf32, #tpu.memory_space<vmem>>) attributes {dimension_semantics = [], scalar_prefetch = 0 : i64, scratch_operands = 0 : i64, tpu.core_type = #tpu.core_type<tc>} {
    %c0 = arith.constant 0 : index
    %c0_0 = arith.constant 0 : index
    %0 = vector.load %arg0[%c0, %c0_0] : memref<2x16xf32, #tpu.memory_space<vmem>>, vector<2x16xf32>
    %c0_1 = arith.constant 0 : index
    %c0_2 = arith.constant 0 : index
    %1 = vector.load %arg1[%c0_1, %c0_2] : memref<4x16xf32, #tpu.memory_space<vmem>>, vector<4x16xf32>
    %cst = arith.constant dense<0.000000e+00> : vector<4xf32>
    %2 = vector.multi_reduction <add>, %1, %cst [1] : vector<4x16xf32> to vector<4xf32>
    %3 = vector.shape_cast %2 : vector<4xf32> to vector<4x1xf32>
    %cst_3 = arith.constant 1.000000e+00 : f32
    %4 = vector.broadcast %cst_3 : f32 to vector<4x1xf32>
    %5 = arith.divf %4, %3 : vector<4x1xf32>
    %6 = vector.extract_strided_slice %0 {offsets = [0, 0], sizes = [1, 16], strides = [1, 1]} : vector<2x16xf32> to vector<1x16xf32>
    %7 = vector.broadcast %6 : vector<1x16xf32> to vector<4x16xf32>
    %8 = arith.mulf %1, %7 : vector<4x16xf32>
    %cst_4 = arith.constant dense<0.000000e+00> : vector<4xf32>
    %9 = vector.multi_reduction <add>, %8, %cst_4 [1] : vector<4x16xf32> to vector<4xf32>
    %10 = vector.shape_cast %9 : vector<4xf32> to vector<4x1xf32>
    %11 = arith.mulf %10, %5 : vector<4x1xf32>
    %12 = vector.extract_strided_slice %0 {offsets = [1, 0], sizes = [1, 16], strides = [1, 1]} : vector<2x16xf32> to vector<1x16xf32>
    %13 = vector.broadcast %12 : vector<1x16xf32> to vector<4x16xf32>
    %14 = arith.mulf %1, %13 : vector<4x16xf32>
    %cst_5 = arith.constant dense<0.000000e+00> : vector<4xf32>
    %15 = vector.multi_reduction <add>, %14, %cst_5 [1] : vector<4x16xf32> to vector<4xf32>
    %16 = vector.shape_cast %15 : vector<4xf32> to vector<4x1xf32>
    %17 = arith.mulf %16, %5 : vector<4x1xf32>
    %cst_6 = arith.constant 6.250000e-02 : f32
    %18 = vector.broadcast %cst_6 : f32 to vector<4x1xf32>
    %19 = arith.mulf %3, %18 : vector<4x1xf32>
    %20 = vector.extract_strided_slice %0 {offsets = [0, 0], sizes = [1, 16], strides = [1, 1]} : vector<2x16xf32> to vector<1x16xf32>
    %21 = vector.broadcast %20 : vector<1x16xf32> to vector<4x16xf32>
    %22 = vector.broadcast %11 : vector<4x1xf32> to vector<4x16xf32>
    %23 = arith.subf %21, %22 : vector<4x16xf32>
    %24 = arith.mulf %23, %23 : vector<4x16xf32>
    %25 = vector.extract_strided_slice %0 {offsets = [1, 0], sizes = [1, 16], strides = [1, 1]} : vector<2x16xf32> to vector<1x16xf32>
    %26 = vector.broadcast %25 : vector<1x16xf32> to vector<4x16xf32>
    %27 = vector.broadcast %17 : vector<4x1xf32> to vector<4x16xf32>
    %28 = arith.subf %26, %27 : vector<4x16xf32>
    %29 = arith.mulf %28, %28 : vector<4x16xf32>
    %30 = arith.addf %24, %29 : vector<4x16xf32>
    %cst_7 = arith.constant dense<0x7F800000> : vector<16xf32>
    %31 = vector.multi_reduction <minimumf>, %30, %cst_7 [0] : vector<4x16xf32> to vector<16xf32>
    %32 = vector.shape_cast %31 : vector<16xf32> to vector<1x16xf32>
    %33 = vector.broadcast %32 : vector<1x16xf32> to vector<4x16xf32>
    %34 = arith.subf %30, %33 : vector<4x16xf32>
    %cst_8 = arith.constant 0.000000e+00 : f32
    %35 = vector.broadcast %cst_8 : f32 to vector<4x16xf32>
    %36 = arith.subf %35, %34 : vector<4x16xf32>
    %37 = math.exp %36 : vector<4x16xf32>
    %38 = vector.broadcast %19 : vector<4x1xf32> to vector<4x16xf32>
    %39 = arith.mulf %37, %38 : vector<4x16xf32>
    %cst_9 = arith.constant dense<0.000000e+00> : vector<16xf32>
    %40 = vector.multi_reduction <add>, %39, %cst_9 [0] : vector<4x16xf32> to vector<16xf32>
    %41 = vector.shape_cast %40 : vector<16xf32> to vector<1x16xf32>
    %42 = vector.broadcast %41 : vector<1x16xf32> to vector<4x16xf32>
    %43 = arith.divf %39, %42 : vector<4x16xf32>
    %c0_10 = arith.constant 0 : index
    %c0_11 = arith.constant 0 : index
    %44 = vector.load %arg2[%c0_10, %c0_11] : memref<4x16xf32, #tpu.memory_space<vmem>>, vector<4x16xf32>
    tpu.vector_store %arg2[%c0_10, %c0_11], %43 {strides = array<i32>} : memref<4x16xf32, #tpu.memory_space<vmem>>, vector<4x16xf32>,
    %cst_12 = arith.constant 0.000000e+00 : f32
    %45 = vector.broadcast %cst_12 : f32 to vector<4x16xf32>
    %46 = arith.subf %45, %1 : vector<4x16xf32>
    %cst_13 = arith.constant 9.99999993E-9 : f32
    %47 = vector.broadcast %cst_13 : f32 to vector<4x16xf32>
    %48 = arith.addf %43, %47 : vector<4x16xf32>
    %49 = math.log %48 : vector<4x16xf32>
    %50 = arith.mulf %46, %49 : vector<4x16xf32>
    %51 = arith.subf %1, %43 : vector<4x16xf32>
    %cst_14 = arith.constant dense<0.000000e+00> : vector<4xf32>
    %52 = vector.multi_reduction <add>, %50, %cst_14 [1] : vector<4x16xf32> to vector<4xf32>
    %53 = vector.shape_cast %52 : vector<4xf32> to vector<4x1xf32>
    %cst_15 = arith.constant dense<0.000000e+00> : vector<1xf32>
    %54 = vector.multi_reduction <add>, %53, %cst_15 [0] : vector<4x1xf32> to vector<1xf32>
    %55 = vector.shape_cast %54 : vector<1xf32> to vector<1x1xf32>
    %56 = arith.mulf %51, %51 : vector<4x16xf32>
    %cst_16 = arith.constant dense<0.000000e+00> : vector<4xf32>
    %57 = vector.multi_reduction <add>, %56, %cst_16 [1] : vector<4x16xf32> to vector<4xf32>
    %58 = vector.shape_cast %57 : vector<4xf32> to vector<4x1xf32>
    %cst_17 = arith.constant dense<0.000000e+00> : vector<1xf32>
    %59 = vector.multi_reduction <add>, %58, %cst_17 [0] : vector<4x1xf32> to vector<1xf32>
    %60 = vector.shape_cast %59 : vector<1xf32> to vector<1x1xf32>
    %61 = tpu.iota {dimensions = array<i32: 1>} : vector<1x2xi32>
    %c0_i32 = arith.constant 0 : i32
    %62 = vector.broadcast %c0_i32 : i32 to vector<1x2xi32>
    %63 = arith.cmpi eq, %61, %62 : vector<1x2xi32>
    %64 = vector.shape_cast %55 : vector<1x1xf32> to vector<1x1xf32>
    %65 = vector.broadcast %64 : vector<1x1xf32> to vector<1x2xf32>
    %66 = vector.shape_cast %60 : vector<1x1xf32> to vector<1x1xf32>
    %67 = vector.broadcast %66 : vector<1x1xf32> to vector<1x2xf32>
    %68 = arith.select %63, %65, %67 : vector<1x2xi1>, vector<1x2xf32>
    %c0_18 = arith.constant 0 : index
    %c0_19 = arith.constant 0 : index
    %69 = vector.load %arg3[%c0_18, %c0_19] : memref<1x2xf32, #tpu.memory_space<vmem>>, vector<1x2xf32>
    tpu.vector_store %arg3[%c0_18, %c0_19], %68 {strides = array<i32>} : memref<1x2xf32, #tpu.memory_space<vmem>>, vector<1x2xf32>,
    return
  }
}

</mosaic_0001>

<llo_original>
// kernel: tpu_custom_call.1
$region0: #{tpu_custom_call.1}
  #allocation0 [shape = 'u32[]', space=smem, size = 0x4, offset = 0x4, fixed_abs, tag = 'smem constant byte address 0x4 - core index']
  #allocation1 [shape = 'u32[144,128]{1,0:T(1,128)}', space=vmem, size = 0x12000, scoped, tag = 'internal scratch']
  %s0 = inlined_call_operand.hbm [shape: f32[2,16], index: 0, kind: input, shape index: {}]
  %s1 = inlined_call_operand.hbm [shape: f32[4,16], index: 1, kind: input, shape index: {}]
  %s2 = inlined_call_operand.hbm [shape: f32[4,16], index: 2, kind: output, shape index: {0}]
  %s3 = inlined_call_operand.hbm [shape: f32[1,2], index: 3, kind: output, shape index: {1}]
  %4 = xla_tuple %s2, %s3
  %s5 = sld [smem:[#allocation0]]
  $region34: #{tpu_custom_call.1} parent=0
    _
  %s7 = ssub.s32 1, %s5
  %s8 = scalar_select 0, %s7, %s5
  $region1: #{tpu_custom_call.1} parent=0
    #allocation2 [shape = 'u8[1024]{0}', space=vmem, size = 0x400, scoped, tag = 'input window, operand 0, single buffered']
    #allocation3 [shape = 's32[1]{0}', space=sflag, size = 0x4, scoped, tag = 'scoped memory for tpu_custom_call.1']
    #allocation4 [shape = 's32[1]{0}', space=sflag, size = 0x4, scoped, tag = 'scoped memory for tpu_custom_call.1']
    #allocation5 [shape = 'u8[2048]{0}', space=vmem, size = 0x800, scoped, tag = 'input window, operand 1, single buffered']
    #allocation6 [shape = 's32[1]{0}', space=sflag, size = 0x4, scoped, tag = 'scoped memory for tpu_custom_call.1']
    #allocation7 [shape = 'u8[2048]{0}', space=vmem, size = 0x800, scoped, tag = 'output window, operand 0, single buffered']
    #allocation8 [shape = 'u8[512]{0}', space=vmem, size = 0x400, scoped, tag = 'output window, operand 1, single buffered']
    #allocation9 [shape = 's32[1]{0}', space=sflag, size = 0x4, scoped, tag = 'scoped memory for tpu_custom_call.1']
    %9 = vsyncpa [#allocation3], 0
    %10 = vsyncpa [#allocation6], 0
    %11 = vsyncpa [#allocation4], 0
    %12 = vsyncpa [#allocation9], 0
    // Predicated region
    $region2: #{tpu_custom_call.1} parent=1 // pred_check
      _
    $region3: #{tpu_custom_call.1} parent=1 // pred_check_branch
      %14 = sbr.rel (0) target = $region5
    $region4: #{tpu_custom_call.1} parent=1 // pred_region
      %s16 = ssub.s32 32, 32
      %17 = vsyncadd [#allocation3], %s16
      %s19 = sshll.u32 [#allocation2], 4
      %s20 = int_to_ptr.vmem [resolvable:$true] %s19
      %22 = dma.hbm_to_vmem [thread:$0]  %s0, 32, %s20, [#allocation3]
    $region5: #{tpu_custom_call.1} parent=1 // pred_fallthru
      _
    // Predicated region
    $region6: #{tpu_custom_call.1} parent=1 // pred_check
      _
    $region7: #{tpu_custom_call.1} parent=1 // pred_check_branch
      %24 = sbr.rel (0) target = $region9
    $region8: #{tpu_custom_call.1} parent=1 // pred_region
      %s26 = ssub.s32 64, 64
      %27 = vsyncadd [#allocation6], %s26
      %s29 = sshll.u32 [#allocation5], 4
      %s30 = int_to_ptr.vmem [resolvable:$true] %s29
      %32 = dma.hbm_to_vmem [thread:$0]  %s1, 64, %s30, [#allocation6]
    $region9: #{tpu_custom_call.1} parent=1 // pred_fallthru
      _
    // Predicated region
    $region10: #{tpu_custom_call.1} parent=1 // pred_check
      _
    $region11: #{tpu_custom_call.1} parent=1 // pred_check_branch
      %34 = sbr.rel (0) target = $region13
    $region12: #{tpu_custom_call.1} parent=1 // pred_region
      %35 = dma.done [#allocation3], 32
    $region13: #{tpu_custom_call.1} parent=1 // pred_fallthru
      _
    // Predicated region
    $region14: #{tpu_custom_call.1} parent=1 // pred_check
      _
    $region15: #{tpu_custom_call.1} parent=1 // pred_check_branch
      %37 = sbr.rel (0) target = $region17
    $region16: #{tpu_custom_call.1} parent=1 // pred_region
      %38 = dma.done [#allocation6], 64
    $region17: #{tpu_custom_call.1} parent=1 // pred_fallthru
      _
    %v39 = vld [vmem:[#allocation2] sm:$0x3]
    %v40 = vld [vmem:[#allocation5] sm:$0xf]
    %vm41 = vcmask 125952
    %v42 = vsel %vm41, %v40, 0.0
    %43 = vadd.xlane.f32.xlu0 %v42
    %v44 = vpop.xlane.xlu0 %43
    %v45 = vrcp.pop %v44
    %v46 = vmul.f32 1.0, %v45
    %v47 = vlaneseq
    %v48 = vshrl.u32 %v47, 7
    %v49 = vsub.s32 0, %v48
    %v50 = vrot.slane %v39, %v49
    %v51 = vmul.f32 %v40, %v50
    %v52 = vsel %vm41, %v51, 0.0
    %53 = vadd.xlane.f32.xlu0 %v52
    %v54 = vpop.xlane.xlu0 %53
    %v55 = vmul.f32 %v54, %v46
    %v56 = vlaneseq
    %v57 = vshrl.u32 %v56, 7
    %v58 = vsub.s32 1, %v57
    %v59 = vrot.slane %v39, %v58
    %v60 = vmul.f32 %v40, %v59
    %v61 = vsel %vm41, %v60, 0.0
    %62 = vadd.xlane.f32.xlu0 %v61
    %v63 = vpop.xlane.xlu0 %62
    %v64 = vmul.f32 %v63, %v46
    %v65 = vmul.f32 %v44, 0.0625
    %v66 = vsub.f32 %v50, %v55
    %v67 = vmul.f32 %v66, %v66
    %v68 = vsub.f32 %v59, %v64
    %v69 = vmul.f32 %v68, %v68
    %v70 = vadd.f32 %v67, %v69
    %v71 = vsel %vm41, %v70, inf
    %v72 = vrot.slane %v71, 4
    %v73 = vmin.f32 %v71, %v72
    %v74 = vrot.slane %v73, 2
    %v75 = vmin.f32 %v73, %v74
    %v76 = vrot.slane %v75, 1
    %v77 = vmin.f32 %v75, %v76
    %v78 = vsub.f32 %v70, %v77
    %v79 = vsub.f32 0.0, %v78
    %v80 = vmul.f32 %v79, 1.442695
    %v81 = vpow.pop %v80
    %v82 = vmul.f32 %v81, %v65
    %v83 = vsel %vm41, %v82, 0.0
    %v84 = vrot.slane %v83, 4
    %v85 = vadd.f32 %v83, %v84
    %v86 = vrot.slane %v85, 2
    %v87 = vadd.f32 %v85, %v86
    %v88 = vrot.slane %v87, 1
    %v89 = vadd.f32 %v87, %v88
    %v90 = vrcp.pop %v89
    %v91 = vmul.f32 %v82, %v90
    %92 = vst.msk [vmem:[#allocation7] sm:$0xf] %vm41, %v91
    %v93 = vsub.f32 0.0, %v40
    %v94 = vadd.f32 %v91, 1e-08
    %v95 = vlog2.pop %v94
    %v96 = vmul.f32 %v95, 0.6931472
    %v97 = vmul.f32 %v93, %v96
    %v98 = vsub.f32 %v40, %v91
    %v99 = vsel %vm41, %v97, 0.0
    %100 = vadd.xlane.f32.xlu0 %v99
    %v101 = vpop.xlane.xlu0 %100
    %vm102 = vcmask 1043456
    %v103 = vsel %vm102, %v101, 0.0
    %v104 = vrot.slane %v103, 4
    %v105 = vadd.f32 %v103, %v104
    %v106 = vrot.slane %v105, 2
    %v107 = vadd.f32 %v105, %v106
    %v108 = vrot.slane %v107, 1
    %v109 = vadd.f32 %v107, %v108
    %v110 = vmul.f32 %v98, %v98
    %v111 = vsel %vm41, %v110, 0.0
    %112 = vadd.xlane.f32.xlu0 %v111
    %v113 = vpop.xlane.xlu0 %112
    %v114 = vsel %vm102, %v113, 0.0
    %v115 = vrot.slane %v114, 4
    %v116 = vadd.f32 %v114, %v115
    %v117 = vrot.slane %v116, 2
    %v118 = vadd.f32 %v116, %v117
    %v119 = vrot.slane %v118, 1
    %v120 = vadd.f32 %v118, %v119
    %v121 = vlaneseq
    %v122 = vand.u32 %v121, 127
    %vm123 = vcmp.eq.s32.totalorder %v122, 0
    %v124 = vsel %vm123, %v109, %v120
    %vm125 = vcmask 8192
    %126 = vst.msk [vmem:[#allocation8] sm:$0x1] %vm125, %v124
    // Predicated region
    $region18: #{tpu_custom_call.1} parent=1 // pred_check
      _
    $region19: #{tpu_custom_call.1} parent=1 // pred_check_branch
      %128 = sbr.rel (0) target = $region21
    $region20: #{tpu_custom_call.1} parent=1 // pred_region
      %s130 = ssub.s32 64, 64
      %131 = vsyncadd [#allocation4], %s130
      %s133 = sshll.u32 [#allocation7], 4
      %s134 = int_to_ptr.vmem [resolvable:$true] %s133
      %136 = dma.vmem_to_hbm [thread:$0]  %s134, 64, %s2, [#allocation4]
    $region21: #{tpu_custom_call.1} parent=1 // pred_fallthru
      _
    // Predicated region
    $region22: #{tpu_custom_call.1} parent=1 // pred_check
      _
    $region23: #{tpu_custom_call.1} parent=1 // pred_check_branch
      %138 = sbr.rel (0) target = $region25
    $region24: #{tpu_custom_call.1} parent=1 // pred_region
      %s140 = ssub.s32 16, 16
      %141 = vsyncadd [#allocation9], %s140
      %s143 = sshll.u32 [#allocation8], 4
      %s144 = int_to_ptr.vmem [resolvable:$true] %s143
      %146 = dma.vmem_to_hbm [thread:$0]  %s144, 16, %s3, [#allocation9]
    $region25: #{tpu_custom_call.1} parent=1 // pred_fallthru
      _
    // Predicated region
    $region26: #{tpu_custom_call.1} parent=1 // pred_check
      _
    $region27: #{tpu_custom_call.1} parent=1 // pred_check_branch
      %148 = sbr.rel (0) target = $region29
    $region28: #{tpu_custom_call.1} parent=1 // pred_region
      %149 = dma.done [#allocation4], 64
    $region29: #{tpu_custom_call.1} parent=1 // pred_fallthru
      _
    // Predicated region
    $region30: #{tpu_custom_call.1} parent=1 // pred_check
      _
    $region31: #{tpu_custom_call.1} parent=1 // pred_check_branch
      %151 = sbr.rel (0) target = $region33
    $region32: #{tpu_custom_call.1} parent=1 // pred_region
      %152 = dma.done [#allocation9], 16
    $region33: #{tpu_custom_call.1} parent=1 // pred_fallthru
      _
    %153 = vsyncpa [#allocation3], 1
    %154 = vsyncpa [#allocation6], 1
    %155 = vsyncpa [#allocation4], 1
    %156 = vsyncpa [#allocation9], 1

</llo_original>
